<compile_context>
chip_gen: v5e
topology: v5e:2x2
jax: 0.10.0
libtpu: 0.0.40
codegen_flags: <defaults>
</compile_context>

<pallas_src>
import functools

import jax
import jax.numpy as jnp
from jax.experimental import pallas as pl
from jax.experimental.pallas import tpu as pltpu

_LANE = 128
_SUBLANE = 8


def _round_up(x, m):
    return (x + m - 1) // m * m


def _lstm_decoder_kernel(state_ref, w_ref, bias_ref, w_lin_ref, out_ref,
                         *, in_pad, h_pad):
    """Fused step: LSTM cell + dropout(p=0)==identity + Linear head.

    state_ref : (TB, in_pad + 2*h_pad)        f32   [x ‖ h0 ‖ c0]
    w_ref     : (in_pad + h_pad, 4*h_pad)     bf16  [W_ih^T ; W_hh^T] (gate blocks 128-padded)
    bias_ref  : (1, 4*h_pad + in_pad)         f32   [b_ih + b_hh ‖ b_lin]
    w_lin_ref : (h_pad, in_pad)               bf16  W_lin^T
    out_ref   : (TB, in_pad + 2*h_pad)        f32   [output ‖ h_n ‖ c_n]
    """
    xh = state_ref[:, : in_pad + h_pad]          # (TB, in_pad + h_pad) f32
    c0 = state_ref[:, in_pad + h_pad:]           # (TB, h_pad)          f32

    # Single fused LSTM-cell matmul on the MXU (bf16 operands, f32 accumulation).
    gates = jnp.dot(xh.astype(jnp.bfloat16), w_ref[...],
                    preferred_element_type=jnp.float32)
    gates = gates + bias_ref[:, : 4 * h_pad]

    # PyTorch gate order (i, f, g, o); h_pad % 128 == 0 so every slice is lane-aligned.
    i = jax.nn.sigmoid(gates[:, 0 * h_pad:1 * h_pad])
    f = jax.nn.sigmoid(gates[:, 1 * h_pad:2 * h_pad])
    g = jnp.tanh(gates[:, 2 * h_pad:3 * h_pad])
    o = jax.nn.sigmoid(gates[:, 3 * h_pad:4 * h_pad])

    c = f * c0 + i * g
    h = o * jnp.tanh(c)

    # Dropout(p=0.0) is the identity.  Linear head: h @ W_lin^T + b_lin.
    y = jnp.dot(h.astype(jnp.bfloat16), w_lin_ref[...],
                preferred_element_type=jnp.float32) + bias_ref[:, 4 * h_pad:]

    # One lane-dense output slab; each segment is a whole number of 128-lane tiles.
    out_ref[:, :in_pad] = y
    out_ref[:, in_pad:in_pad + h_pad] = h
    out_ref[:, in_pad + h_pad:] = c


def lstm_decoder_forward(x_input, encoder_hidden_states, params):
    """Mirrors LstmDecoder.forward (num_layers=1, dropout p=0.0).

    x_input: (B, input_size); encoder_hidden_states: (h0, c0) each (1, B, hidden)
    returns (output (B, input_size), (h_n, c_n) each (1, B, hidden))
    """
    h0, c0 = encoder_hidden_states
    B, input_size = x_input.shape
    hidden_size = h0.shape[-1]

    w_lin_t = params["w_lin_t"]
    h_pad, in_pad = w_lin_t.shape               # static padded sizes (from param shapes)
    slab = in_pad + 2 * h_pad

    b_pad = _round_up(B, _SUBLANE)              # >= 8 rows so M isn't degenerate
    tb = min(b_pad, 256)                        # batch rows per grid step

    def pad2(a, rows, cols):
        return jnp.pad(a, ((0, rows - a.shape[0]), (0, cols - a.shape[1])))

    # Pack x, h0, c0 into one lane-dense state slab (single input DMA).
    state = jnp.concatenate(
        [pad2(x_input, b_pad, in_pad),
         pad2(h0[0], b_pad, h_pad),
         pad2(c0[0], b_pad, h_pad)], axis=-1)    # (b_pad, slab) f32

    kernel = functools.partial(_lstm_decoder_kernel, in_pad=in_pad, h_pad=h_pad)

    out_slab = pl.pallas_call(
        kernel,
        out_shape=jax.ShapeDtypeStruct((b_pad, slab), jnp.float32),
        grid=(b_pad // tb,),
        in_specs=[
            pl.BlockSpec((tb, slab), lambda i: (i, 0)),                   # [x‖h0‖c0] tile
            pl.BlockSpec((in_pad + h_pad, 4 * h_pad), lambda i: (0, 0)),  # fused W (resident)
            pl.BlockSpec((1, 4 * h_pad + in_pad), lambda i: (0, 0)),      # fused bias
            pl.BlockSpec((h_pad, in_pad), lambda i: (0, 0)),              # W_lin^T
        ],
        out_specs=pl.BlockSpec((tb, slab), lambda i: (i, 0)),
        compiler_params=pltpu.CompilerParams(
            dimension_semantics=("parallel",)),  # batch tiles -> both TCs on v7x
    )(state, params["w_fused"], params["bias_all"], w_lin_t)

    output = out_slab[:B, :input_size]
    h_n = out_slab[:B, in_pad:in_pad + hidden_size]
    c_n = out_slab[:B, in_pad + h_pad:in_pad + h_pad + hidden_size]
    return output, (h_n[None, :, :], c_n[None, :, :])


def init_params(key, input_size, hidden_size):
    """PyTorch-shaped f32 params, U(-1/sqrt(H), 1/sqrt(H)) like nn.LSTM / nn.Linear."""
    ks = jax.random.split(key, 6)
    bound = 1.0 / jnp.sqrt(jnp.float32(hidden_size))

    def u(k, shape):
        return jax.random.uniform(k, shape, jnp.float32, -bound, bound)

    return {
        "w_ih": u(ks[0], (4 * hidden_size, input_size)),    # nn.LSTM weight_ih_l0
        "w_hh": u(ks[1], (4 * hidden_size, hidden_size)),   # nn.LSTM weight_hh_l0
        "b_ih": u(ks[2], (4 * hidden_size,)),
        "b_hh": u(ks[3], (4 * hidden_size,)),
        "w_lin": u(ks[4], (input_size, hidden_size)),       # nn.Linear weight
        "b_lin": u(ks[5], (input_size,)),
    }


def pack_params(raw, input_size, hidden_size):
    """One-time glue: fuse x/h weights, pre-sum biases, pad every feature axis to a
    128-lane multiple (per gate), and cast matmul weights to bf16."""
    in_pad = _round_up(input_size, _LANE)
    h_pad = _round_up(hidden_size, _LANE)

    w_fused = jnp.zeros((in_pad + h_pad, 4 * h_pad), jnp.float32)
    bias_all = jnp.zeros((1, 4 * h_pad + in_pad), jnp.float32)
    b_sum = raw["b_ih"] + raw["b_hh"]
    for gate in range(4):                              # PyTorch order i, f, g, o
        src = slice(gate * hidden_size, (gate + 1) * hidden_size)
        dst = slice(gate * h_pad, gate * h_pad + hidden_size)
        w_fused = w_fused.at[:input_size, dst].set(raw["w_ih"][src, :].T)
        w_fused = w_fused.at[in_pad:in_pad + hidden_size, dst].set(raw["w_hh"][src, :].T)
        bias_all = bias_all.at[0, dst].set(b_sum[src])
    bias_all = bias_all.at[0, 4 * h_pad:4 * h_pad + input_size].set(raw["b_lin"])

    w_lin_t = jnp.zeros((h_pad, in_pad), jnp.float32)
    w_lin_t = w_lin_t.at[:hidden_size, :input_size].set(raw["w_lin"].T)

    # Zero padding keeps padded lanes inert: gate preact 0 -> f=i=o=0.5, g=0, and with
    # c0 padding = 0 the padded c/h stay exactly 0, so they never contaminate real lanes.
    return {
        "w_fused": w_fused.astype(jnp.bfloat16),   # (in_pad + h_pad, 4*h_pad)
        "bias_all": bias_all,                      # (1, 4*h_pad + in_pad) f32
        "w_lin_t": w_lin_t.astype(jnp.bfloat16),   # (h_pad, in_pad)
    }


def _reference(x, h0, c0, raw):
    """Pure-JAX reference with the same bf16-operand / f32-accumulate matmuls."""
    bf = jnp.bfloat16
    H = h0.shape[-1]
    gates = (jnp.dot(x.astype(bf), raw["w_ih"].T.astype(bf),
                     preferred_element_type=jnp.float32)
             + jnp.dot(h0.astype(bf), raw["w_hh"].T.astype(bf),
                       preferred_element_type=jnp.float32)
             + raw["b_ih"] + raw["b_hh"])
    i = jax.nn.sigmoid(gates[:, 0 * H:1 * H])
    f = jax.nn.sigmoid(gates[:, 1 * H:2 * H])
    g = jnp.tanh(gates[:, 2 * H:3 * H])
    o = jax.nn.sigmoid(gates[:, 3 * H:4 * H])
    c = f * c0 + i * g
    h = o * jnp.tanh(c)
    out = jnp.dot(h.astype(bf), raw["w_lin"].T.astype(bf),
                  preferred_element_type=jnp.float32) + raw["b_lin"]
    return out, h, c


if __name__ == "__main__":
    # TODO(synk): num_layers > 1 and dropout p > 0 not exercised (module defaults 1 / 0.0).
    # TODO(synk): for autoregressive decode, move the timestep loop inside the kernel
    #             (resident weights, in-place h/c via input_output_aliases); the module's
    #             forward is a single step, so only the single-step kernel is shown.
    B, input_size, hidden_size = 2, 16, 32

    key = jax.random.PRNGKey(0)
    k_x, k_h, k_c, k_p = jax.random.split(key, 4)

    x = jax.random.normal(k_x, (B, input_size), jnp.float32)
    h0 = jax.random.normal(k_h, (1, B, hidden_size), jnp.float32)
    c0 = jax.random.normal(k_c, (1, B, hidden_size), jnp.float32)

    raw = init_params(k_p, input_size, hidden_size)
    params = pack_params(raw, input_size, hidden_size)

    fwd = jax.jit(lstm_decoder_forward)
    output, (h_n, c_n) = fwd(x, (h0, c0), params)
    jax.block_until_ready((output, h_n, c_n))

    assert output.shape == (B, input_size)
    assert h_n.shape == (1, B, hidden_size) and c_n.shape == (1, B, hidden_size)

    ref_out, ref_h, ref_c = _reference(x, h0[0], c0[0], raw)
    assert jnp.allclose(output, ref_out, atol=1e-2, rtol=1e-2), "output mismatch"
    assert jnp.allclose(h_n[0], ref_h, atol=1e-2, rtol=1e-2), "h_n mismatch"
    assert jnp.allclose(c_n[0], ref_c, atol=1e-2, rtol=1e-2), "c_n mismatch"

    print("KERNEL_OK")
</pallas_src>

<mosaic_0001>
module attributes {stable_mosaic.version = 11 : i64} {
  func.func @_lstm_decoder_kernel(%arg0: i32, %arg1: memref<8x384xf32, #tpu.memory_space<vmem>>, %arg2: memref<256x512xbf16, #tpu.memory_space<vmem>>, %arg3: memref<1x640xf32, #tpu.memory_space<vmem>>, %arg4: memref<128x128xbf16, #tpu.memory_space<vmem>>, %arg5: memref<8x384xf32, #tpu.memory_space<vmem>>) attributes {dimension_semantics = [#tpu.dimension_semantics<parallel>], iteration_bounds = array<i64: 1>, scalar_prefetch = 0 : i64, scratch_operands = 0 : i64, tpu.core_type = #tpu.core_type<tc>, window_params = [{transform_indices = @transform_0, window_bounds = array<i64: 8, 384>}, {pipeline_mode = #tpu.pipeline_mode<synchronous>, transform_indices = @transform_1, window_bounds = array<i64: 256, 512>}, {pipeline_mode = #tpu.pipeline_mode<synchronous>, transform_indices = @transform_2, window_bounds = array<i64: 1, 640>}, {pipeline_mode = #tpu.pipeline_mode<synchronous>, transform_indices = @transform_3, window_bounds = array<i64: 128, 128>}, {transform_indices = @transform_4, window_bounds = array<i64: 8, 384>}]} {
    %c0 = arith.constant 0 : index
    %c0_0 = arith.constant 0 : index
    %0 = vector.load %arg1[%c0, %c0_0] : memref<8x384xf32, #tpu.memory_space<vmem>>, vector<8x256xf32>
    %c0_1 = arith.constant 0 : index
    %c256 = arith.constant 256 : index
    %1 = vector.load %arg1[%c0_1, %c256] : memref<8x384xf32, #tpu.memory_space<vmem>>, vector<8x128xf32>
    %2 = arith.truncf %0 : vector<8x256xf32> to vector<8x256xbf16>
    %c0_2 = arith.constant 0 : index
    %c0_3 = arith.constant 0 : index
    %3 = vector.load %arg2[%c0_2, %c0_3] : memref<256x512xbf16, #tpu.memory_space<vmem>>, vector<256x512xbf16>
    %cst = arith.constant dense<0.000000e+00> : vector<8x512xf32>
    %4 = tpu.matmul %2, %3, %cst {dimension_numbers = #tpu.dot_dimension_numbers<[1], [0], [0], [1], [0, 0, 1, 1], [], []>} : vector<8x256xbf16>, vector<256x512xbf16>, vector<8x512xf32> -> vector<8x512xf32>
    %c0_4 = arith.constant 0 : index
    %c0_5 = arith.constant 0 : index
    %5 = vector.load %arg3[%c0_4, %c0_5] : memref<1x640xf32, #tpu.memory_space<vmem>>, vector<1x512xf32>
    %6 = vector.broadcast %5 : vector<1x512xf32> to vector<8x512xf32>
    %7 = arith.addf %4, %6 : vector<8x512xf32>
    %8 = vector.extract_strided_slice %7 {offsets = [0, 0], sizes = [8, 128], strides = [1, 1]} : vector<8x512xf32> to vector<8x128xf32>
    %9 = arith.negf %8 : vector<8x128xf32>
    %10 = math.exp %9 : vector<8x128xf32>
    %cst_6 = arith.constant 1.000000e+00 : f32
    %11 = vector.broadcast %cst_6 : f32 to vector<8x128xf32>
    %12 = arith.addf %11, %10 : vector<8x128xf32>
    %13 = arith.divf %11, %12 : vector<8x128xf32>
    %14 = vector.extract_strided_slice %7 {offsets = [0, 128], sizes = [8, 128], strides = [1, 1]} : vector<8x512xf32> to vector<8x128xf32>
    %15 = arith.negf %14 : vector<8x128xf32>
    %16 = math.exp %15 : vector<8x128xf32>
    %cst_7 = arith.constant 1.000000e+00 : f32
    %17 = vector.broadcast %cst_7 : f32 to vector<8x128xf32>
    %18 = arith.addf %17, %16 : vector<8x128xf32>
    %19 = arith.divf %17, %18 : vector<8x128xf32>
    %20 = vector.extract_strided_slice %7 {offsets = [0, 256], sizes = [8, 128], strides = [1, 1]} : vector<8x512xf32> to vector<8x128xf32>
    %21 = math.tanh %20 : vector<8x128xf32>
    %22 = vector.extract_strided_slice %7 {offsets = [0, 384], sizes = [8, 128], strides = [1, 1]} : vector<8x512xf32> to vector<8x128xf32>
    %23 = arith.negf %22 : vector<8x128xf32>
    %24 = math.exp %23 : vector<8x128xf32>
    %cst_8 = arith.constant 1.000000e+00 : f32
    %25 = vector.broadcast %cst_8 : f32 to vector<8x128xf32>
    %26 = arith.addf %25, %24 : vector<8x128xf32>
    %27 = arith.divf %25, %26 : vector<8x128xf32>
    %28 = arith.mulf %19, %1 : vector<8x128xf32>
    %29 = arith.mulf %13, %21 : vector<8x128xf32>
    %30 = arith.addf %28, %29 : vector<8x128xf32>
    %31 = math.tanh %30 : vector<8x128xf32>
    %32 = arith.mulf %27, %31 : vector<8x128xf32>
    %33 = arith.truncf %32 : vector<8x128xf32> to vector<8x128xbf16>
    %c0_9 = arith.constant 0 : index
    %c0_10 = arith.constant 0 : index
    %34 = vector.load %arg4[%c0_9, %c0_10] : memref<128x128xbf16, #tpu.memory_space<vmem>>, vector<128x128xbf16>
    %cst_11 = arith.constant dense<0.000000e+00> : vector<8x128xf32>
    %35 = tpu.matmul %33, %34, %cst_11 {dimension_numbers = #tpu.dot_dimension_numbers<[1], [0], [0], [1], [0, 0, 1, 1], [], []>} : vector<8x128xbf16>, vector<128x128xbf16>, vector<8x128xf32> -> vector<8x128xf32>
    %c0_12 = arith.constant 0 : index
    %c512 = arith.constant 512 : index
    %36 = vector.load %arg3[%c0_12, %c512] : memref<1x640xf32, #tpu.memory_space<vmem>>, vector<1x128xf32>
    %37 = vector.broadcast %36 : vector<1x128xf32> to vector<8x128xf32>
    %38 = arith.addf %35, %37 : vector<8x128xf32>
    %c0_13 = arith.constant 0 : index
    %c0_14 = arith.constant 0 : index
    %39 = vector.load %arg5[%c0_13, %c0_14] : memref<8x384xf32, #tpu.memory_space<vmem>>, vector<8x128xf32>
    tpu.vector_store %arg5[%c0_13, %c0_14], %38 {strides = array<i32>} : memref<8x384xf32, #tpu.memory_space<vmem>>, vector<8x128xf32>,
    %c0_15 = arith.constant 0 : index
    %c128 = arith.constant 128 : index
    %40 = vector.load %arg5[%c0_15, %c128] : memref<8x384xf32, #tpu.memory_space<vmem>>, vector<8x128xf32>
    tpu.vector_store %arg5[%c0_15, %c128], %32 {strides = array<i32>} : memref<8x384xf32, #tpu.memory_space<vmem>>, vector<8x128xf32>,
    %c0_16 = arith.constant 0 : index
    %c256_17 = arith.constant 256 : index
    %41 = vector.load %arg5[%c0_16, %c256_17] : memref<8x384xf32, #tpu.memory_space<vmem>>, vector<8x128xf32>
    tpu.vector_store %arg5[%c0_16, %c256_17], %30 {strides = array<i32>} : memref<8x384xf32, #tpu.memory_space<vmem>>, vector<8x128xf32>,
    return
  }
  func.func @transform_0(%arg0: i32) -> (i32, i32) {
    %c0_i32 = arith.constant 0 : i32
    %c0_i32_0 = arith.constant 0 : i32
    return %arg0, %c0_i32 : i32, i32
  }
  func.func @transform_1(%arg0: i32) -> (i32, i32) {
    %c0_i32 = arith.constant 0 : i32
    %c0_i32_0 = arith.constant 0 : i32
    %c0_i32_1 = arith.constant 0 : i32
    return %c0_i32, %c0_i32_0 : i32, i32
  }
  func.func @transform_2(%arg0: i32) -> (i32, i32) {
    %c0_i32 = arith.constant 0 : i32
    %c0_i32_0 = arith.constant 0 : i32
    %c0_i32_1 = arith.constant 0 : i32
    return %c0_i32, %c0_i32_0 : i32, i32
  }
  func.func @transform_3(%arg0: i32) -> (i32, i32) {
    %c0_i32 = arith.constant 0 : i32
    %c0_i32_0 = arith.constant 0 : i32
    %c0_i32_1 = arith.constant 0 : i32
    return %c0_i32, %c0_i32_0 : i32, i32
  }
  func.func @transform_4(%arg0: i32) -> (i32, i32) {
    %c0_i32 = arith.constant 0 : i32
    %c0_i32_0 = arith.constant 0 : i32
    return %arg0, %c0_i32 : i32, i32
  }
}

</mosaic_0001>

<llo_original>
// kernel: lstm_decoder_forward.1
$region0: #{lstm_decoder_forward.1}
  #allocation0 [shape = 'u32[]', space=smem, size = 0x4, offset = 0x4, fixed_abs, tag = 'smem constant byte address 0x4 - core index']
  #allocation1 [shape = 'u32[72,128]{1,0:T(1,128)}', space=vmem, size = 0x9000, scoped, tag = 'internal scratch']
  %s0 = inlined_call_operand.vmem [shape: f32[8,384], index: 0, kind: input, shape index: {}]
  %s1 = inlined_call_operand.hbm [shape: bf16[256,512], index: 1, kind: input, shape index: {}]
  %s2 = inlined_call_operand.vmem [shape: f32[1,640], index: 2, kind: input, shape index: {}]
  %s3 = inlined_call_operand.hbm [shape: bf16[128,128], index: 3, kind: input, shape index: {}]
  %s4 = inlined_call_operand.vmem [shape: f32[8,384], index: 4, kind: output, shape index: {}]
  %s5 = sld [smem:[#allocation0]]
  $region34: #{lstm_decoder_forward.1} parent=0
    _
  %s7 = ssub.s32 1, %s5
  %s8 = scalar_select 0, %s7, %s5
  $region1: #{lstm_decoder_forward.1} parent=0
    #allocation2 [shape = 'u8[262144]{0}', space=vmem, size = 0x40000, scoped, tag = 'input window, operand 1, single buffered']
    #allocation3 [shape = 's32[1]{0}', space=sflag, size = 0x4, scoped, tag = 'scoped memory for lstm_decoder_forward.1']
    #allocation4 [shape = 'u8[32768]{0}', space=vmem, size = 0x8000, scoped, tag = 'input window, operand 3, single buffered']
    #allocation5 [shape = 's32[1]{0}', space=sflag, size = 0x4, scoped, tag = 'scoped memory for lstm_decoder_forward.1']
    %9 = vsyncpa [#allocation3], 0
    %10 = vsyncpa [#allocation5], 0
    // Predicated region
    $region2: #{lstm_decoder_forward.1} parent=1 // pred_check
      _
    $region3: #{lstm_decoder_forward.1} parent=1 // pred_check_branch
      %12 = sbr.rel (0) target = $region5
    $region4: #{lstm_decoder_forward.1} parent=1 // pred_region
      _
    $region5: #{lstm_decoder_forward.1} parent=1 // pred_fallthru
      _
    // Predicated region
    $region6: #{lstm_decoder_forward.1} parent=1 // pred_check
      _
    $region7: #{lstm_decoder_forward.1} parent=1 // pred_check_branch
      %14 = sbr.rel (0) target = $region9
    $region8: #{lstm_decoder_forward.1} parent=1 // pred_region
      %16 = vsyncadd [#allocation3], 0
      %s17 = sshll.u32 %s1, 4
      %s18 = int_to_ptr.hbm [resolvable:$true] %s17
      %s19 = sshll.u32 [#allocation2], 4
      %s20 = int_to_ptr.vmem [resolvable:$true] %s19
      %25 = dma.hbm_to_vmem [thread:$0]  %s18, 8192, %s20, [#allocation3], 256, 256, 16
    $region9: #{lstm_decoder_forward.1} parent=1 // pred_fallthru
      _
    // Predicated region
    $region10: #{lstm_decoder_forward.1} parent=1 // pred_check
      _
    $region11: #{lstm_decoder_forward.1} parent=1 // pred_check_branch
      %27 = sbr.rel (0) target = $region13
    $region12: #{lstm_decoder_forward.1} parent=1 // pred_region
      _
    $region13: #{lstm_decoder_forward.1} parent=1 // pred_fallthru
      _
    // Predicated region
    $region14: #{lstm_decoder_forward.1} parent=1 // pred_check
      _
    $region15: #{lstm_decoder_forward.1} parent=1 // pred_check_branch
      %29 = sbr.rel (0) target = $region17
    $region16: #{lstm_decoder_forward.1} parent=1 // pred_region
      %31 = vsyncadd [#allocation5], 0
      %s32 = sshll.u32 %s3, 4
      %s33 = int_to_ptr.hbm [resolvable:$true] %s32
      %s34 = sshll.u32 [#allocation4], 4
      %s35 = int_to_ptr.vmem [resolvable:$true] %s34
      %40 = dma.hbm_to_vmem [thread:$0]  %s33, 1024, %s35, [#allocation5], 64, 64, 4
    $region17: #{lstm_decoder_forward.1} parent=1 // pred_fallthru
      _
    // Predicated region
    $region18: #{lstm_decoder_forward.1} parent=1 // pred_check
      _
    $region19: #{lstm_decoder_forward.1} parent=1 // pred_check_branch
      %42 = sbr.rel (0) target = $region21
    $region20: #{lstm_decoder_forward.1} parent=1 // pred_region
      %44 = dma.done [#allocation3], 8192
    $region21: #{lstm_decoder_forward.1} parent=1 // pred_fallthru
      _
    // Predicated region
    $region22: #{lstm_decoder_forward.1} parent=1 // pred_check
      _
    $region23: #{lstm_decoder_forward.1} parent=1 // pred_check_branch
      %46 = sbr.rel (0) target = $region25
    $region24: #{lstm_decoder_forward.1} parent=1 // pred_region
      %48 = dma.done [#allocation5], 1024
    $region25: #{lstm_decoder_forward.1} parent=1 // pred_fallthru
      _
    %v49 = vld [vmem:[%s0] sm:$0xff]
    %v50 = vld [vmem:[%s0 + $0x8] sm:$0xff]
    %v51 = vld [vmem:[%s0 + $0x10] sm:$0xff]
    %v52 = vpack.c.bf16 %v49, %v49
    %v53 = vpack.c.bf16 %v50, %v50
    %v54 = vld [vmem:[#allocation2] sm:$0xff]
    %v55 = vld [vmem:[#allocation2 + $0x8] sm:$0xff]
    %v56 = vld [vmem:[#allocation2 + $0x10] sm:$0xff]
    %v57 = vld [vmem:[#allocation2 + $0x18] sm:$0xff]
    %v58 = vld [vmem:[#allocation2 + $0x20] sm:$0xff]
    %v59 = vld [vmem:[#allocation2 + $0x28] sm:$0xff]
    %v60 = vld [vmem:[#allocation2 + $0x30] sm:$0xff]
    %v61 = vld [vmem:[#allocation2 + $0x38] sm:$0xff]
    %v62 = vld [vmem:[#allocation2 + $0x40] sm:$0xff]
    %v63 = vld [vmem:[#allocation2 + $0x48] sm:$0xff]
    %v64 = vld [vmem:[#allocation2 + $0x50] sm:$0xff]
    %v65 = vld [vmem:[#allocation2 + $0x58] sm:$0xff]
    %v66 = vld [vmem:[#allocation2 + $0x60] sm:$0xff]
    %v67 = vld [vmem:[#allocation2 + $0x68] sm:$0xff]
    %v68 = vld [vmem:[#allocation2 + $0x70] sm:$0xff]
    %v69 = vld [vmem:[#allocation2 + $0x78] sm:$0xff]
    %v70 = vld [vmem:[#allocation2 + $0x80] sm:$0xff]
    %v71 = vld [vmem:[#allocation2 + $0x88] sm:$0xff]
    %v72 = vld [vmem:[#allocation2 + $0x90] sm:$0xff]
    %v73 = vld [vmem:[#allocation2 + $0x98] sm:$0xff]
    %v74 = vld [vmem:[#allocation2 + $0xa0] sm:$0xff]
    %v75 = vld [vmem:[#allocation2 + $0xa8] sm:$0xff]
    %v76 = vld [vmem:[#allocation2 + $0xb0] sm:$0xff]
    %v77 = vld [vmem:[#allocation2 + $0xb8] sm:$0xff]
    %v78 = vld [vmem:[#allocation2 + $0xc0] sm:$0xff]
    %v79 = vld [vmem:[#allocation2 + $0xc8] sm:$0xff]
    %v80 = vld [vmem:[#allocation2 + $0xd0] sm:$0xff]
    %v81 = vld [vmem:[#allocation2 + $0xd8] sm:$0xff]
    %v82 = vld [vmem:[#allocation2 + $0xe0] sm:$0xff]
    %v83 = vld [vmem:[#allocation2 + $0xe8] sm:$0xff]
    %v84 = vld [vmem:[#allocation2 + $0xf0] sm:$0xff]
    %v85 = vld [vmem:[#allocation2 + $0xf8] sm:$0xff]
    %v86 = vld [vmem:[#allocation2 + $0x100] sm:$0xff]
    %v87 = vld [vmem:[#allocation2 + $0x108] sm:$0xff]
    %v88 = vld [vmem:[#allocation2 + $0x110] sm:$0xff]
    %v89 = vld [vmem:[#allocation2 + $0x118] sm:$0xff]
    %v90 = vld [vmem:[#allocation2 + $0x120] sm:$0xff]
    %v91 = vld [vmem:[#allocation2 + $0x128] sm:$0xff]
    %v92 = vld [vmem:[#allocation2 + $0x130] sm:$0xff]
    %v93 = vld [vmem:[#allocation2 + $0x138] sm:$0xff]
    %v94 = vld [vmem:[#allocation2 + $0x140] sm:$0xff]
    %v95 = vld [vmem:[#allocation2 + $0x148] sm:$0xff]
    %v96 = vld [vmem:[#allocation2 + $0x150] sm:$0xff]
    %v97 = vld [vmem:[#allocation2 + $0x158] sm:$0xff]
    %v98 = vld [vmem:[#allocation2 + $0x160] sm:$0xff]
    %v99 = vld [vmem:[#allocation2 + $0x168] sm:$0xff]
    %v100 = vld [vmem:[#allocation2 + $0x170] sm:$0xff]
    %v101 = vld [vmem:[#allocation2 + $0x178] sm:$0xff]
    %v102 = vld [vmem:[#allocation2 + $0x180] sm:$0xff]
    %v103 = vld [vmem:[#allocation2 + $0x188] sm:$0xff]
    %v104 = vld [vmem:[#allocation2 + $0x190] sm:$0xff]
    %v105 = vld [vmem:[#allocation2 + $0x198] sm:$0xff]
    %v106 = vld [vmem:[#allocation2 + $0x1a0] sm:$0xff]
    %v107 = vld [vmem:[#allocation2 + $0x1a8] sm:$0xff]
    %v108 = vld [vmem:[#allocation2 + $0x1b0] sm:$0xff]
    %v109 = vld [vmem:[#allocation2 + $0x1b8] sm:$0xff]
    %v110 = vld [vmem:[#allocation2 + $0x1c0] sm:$0xff]
    %v111 = vld [vmem:[#allocation2 + $0x1c8] sm:$0xff]
    %v112 = vld [vmem:[#allocation2 + $0x1d0] sm:$0xff]
    %v113 = vld [vmem:[#allocation2 + $0x1d8] sm:$0xff]
    %v114 = vld [vmem:[#allocation2 + $0x1e0] sm:$0xff]
    %v115 = vld [vmem:[#allocation2 + $0x1e8] sm:$0xff]
    %v116 = vld [vmem:[#allocation2 + $0x1f0] sm:$0xff]
    %v117 = vld [vmem:[#allocation2 + $0x1f8] sm:$0xff]
    %v118 = vld [vmem:[%s2] sm:$0xf]
    %v120 = vperm.slane %v118, 0
    %v121 = vperm.slane %v118, 1
    %v122 = vperm.slane %v118, 2
    %v123 = vperm.slane %v118, 3
    %v192 = vunpack.c.l.b16 %v54
    %v193 = vunpack.c.h.b16 %v54
    %v194 = vunpack.c.l.b16 %v55
    %v195 = vunpack.c.h.b16 %v55
    %v196 = vunpack.c.l.b16 %v56
    %v197 = vunpack.c.h.b16 %v56
    %v198 = vunpack.c.l.b16 %v57
    %v199 = vunpack.c.h.b16 %v57
    %v200 = vunpack.c.l.b16 %v58
    %v201 = vunpack.c.h.b16 %v58
    %v202 = vunpack.c.l.b16 %v59
    %v203 = vunpack.c.h.b16 %v59
    %v204 = vunpack.c.l.b16 %v60
    %v205 = vunpack.c.h.b16 %v60
    %v206 = vunpack.c.l.b16 %v61
    %v207 = vunpack.c.h.b16 %v61
    %v208 = vunpack.c.l.b16 %v62
    %v209 = vunpack.c.h.b16 %v62
    %v210 = vunpack.c.l.b16 %v63
    %v211 = vunpack.c.h.b16 %v63
    %v212 = vunpack.c.l.b16 %v64
    %v213 = vunpack.c.h.b16 %v64
    %v214 = vunpack.c.l.b16 %v65
    %v215 = vunpack.c.h.b16 %v65
    %v216 = vunpack.c.l.b16 %v66
    %v217 = vunpack.c.h.b16 %v66
    %v218 = vunpack.c.l.b16 %v67
    %v219 = vunpack.c.h.b16 %v67
    %v220 = vunpack.c.l.b16 %v68
    %v221 = vunpack.c.h.b16 %v68
    %v222 = vunpack.c.l.b16 %v69
    %v223 = vunpack.c.h.b16 %v69
    %v224 = vunpack.c.l.b16 %v70
    %v225 = vunpack.c.h.b16 %v70
    %v226 = vunpack.c.l.b16 %v71
    %v227 = vunpack.c.h.b16 %v71
    %v228 = vunpack.c.l.b16 %v72
    %v229 = vunpack.c.h.b16 %v72
    %v230 = vunpack.c.l.b16 %v73
    %v231 = vunpack.c.h.b16 %v73
    %v232 = vunpack.c.l.b16 %v74
    %v233 = vunpack.c.h.b16 %v74
    %v234 = vunpack.c.l.b16 %v75
    %v235 = vunpack.c.h.b16 %v75
    %v236 = vunpack.c.l.b16 %v76
    %v237 = vunpack.c.h.b16 %v76
    %v238 = vunpack.c.l.b16 %v77
    %v239 = vunpack.c.h.b16 %v77
    %v240 = vunpack.c.l.b16 %v78
    %v241 = vunpack.c.h.b16 %v78
    %v242 = vunpack.c.l.b16 %v79
    %v243 = vunpack.c.h.b16 %v79
    %v244 = vunpack.c.l.b16 %v80
    %v245 = vunpack.c.h.b16 %v80
    %v246 = vunpack.c.l.b16 %v81
    %v247 = vunpack.c.h.b16 %v81
    %v248 = vunpack.c.l.b16 %v82
    %v249 = vunpack.c.h.b16 %v82
    %v250 = vunpack.c.l.b16 %v83
    %v251 = vunpack.c.h.b16 %v83
    %v252 = vunpack.c.l.b16 %v84
    %v253 = vunpack.c.h.b16 %v84
    %v254 = vunpack.c.l.b16 %v85
    %v255 = vunpack.c.h.b16 %v85
    %v256 = vunpack.c.l.b16 %v86
    %v257 = vunpack.c.h.b16 %v86
    %v258 = vunpack.c.l.b16 %v87
    %v259 = vunpack.c.h.b16 %v87
    %v260 = vunpack.c.l.b16 %v88
    %v261 = vunpack.c.h.b16 %v88
    %v262 = vunpack.c.l.b16 %v89
    %v263 = vunpack.c.h.b16 %v89
    %v264 = vunpack.c.l.b16 %v90
    %v265 = vunpack.c.h.b16 %v90
    %v266 = vunpack.c.l.b16 %v91
    %v267 = vunpack.c.h.b16 %v91
    %v268 = vunpack.c.l.b16 %v92
    %v269 = vunpack.c.h.b16 %v92
    %v270 = vunpack.c.l.b16 %v93
    %v271 = vunpack.c.h.b16 %v93
    %v272 = vunpack.c.l.b16 %v94
    %v273 = vunpack.c.h.b16 %v94
    %v274 = vunpack.c.l.b16 %v95
    %v275 = vunpack.c.h.b16 %v95
    %v276 = vunpack.c.l.b16 %v96
    %v277 = vunpack.c.h.b16 %v96
    %v278 = vunpack.c.l.b16 %v97
    %v279 = vunpack.c.h.b16 %v97
    %v280 = vunpack.c.l.b16 %v98
    %v281 = vunpack.c.h.b16 %v98
    %v282 = vunpack.c.l.b16 %v99
    %v283 = vunpack.c.h.b16 %v99
    %v284 = vunpack.c.l.b16 %v100
    %v285 = vunpack.c.h.b16 %v100
    %v286 = vunpack.c.l.b16 %v101
    %v287 = vunpack.c.h.b16 %v101
    %v288 = vunpack.c.l.b16 %v102
    %v289 = vunpack.c.h.b16 %v102
    %v290 = vunpack.c.l.b16 %v103
    %v291 = vunpack.c.h.b16 %v103
    %v292 = vunpack.c.l.b16 %v104
    %v293 = vunpack.c.h.b16 %v104
    %v294 = vunpack.c.l.b16 %v105
    %v295 = vunpack.c.h.b16 %v105
    %v296 = vunpack.c.l.b16 %v106
    %v297 = vunpack.c.h.b16 %v106
    %v298 = vunpack.c.l.b16 %v107
    %v299 = vunpack.c.h.b16 %v107
    %v300 = vunpack.c.l.b16 %v108
    %v301 = vunpack.c.h.b16 %v108
    %v302 = vunpack.c.l.b16 %v109
    %v303 = vunpack.c.h.b16 %v109
    %v304 = vunpack.c.l.b16 %v110
    %v305 = vunpack.c.h.b16 %v110
    %v306 = vunpack.c.l.b16 %v111
    %v307 = vunpack.c.h.b16 %v111
    %v308 = vunpack.c.l.b16 %v112
    %v309 = vunpack.c.h.b16 %v112
    %v310 = vunpack.c.l.b16 %v113
    %v311 = vunpack.c.h.b16 %v113
    %v312 = vunpack.c.l.b16 %v114
    %v313 = vunpack.c.h.b16 %v114
    %v314 = vunpack.c.l.b16 %v115
    %v315 = vunpack.c.h.b16 %v115
    %v316 = vunpack.c.l.b16 %v116
    %v317 = vunpack.c.h.b16 %v116
    %v318 = vunpack.c.l.b16 %v117
    %v319 = vunpack.c.h.b16 %v117
    %v320 = vpack.c.b16 %v196, %v192
    %v321 = vpack.c.b16 %v197, %v193
    %v322 = vpack.c.b16 %v198, %v194
    %v323 = vpack.c.b16 %v199, %v195
    %v324 = vpack.c.b16 %v204, %v200
    %v325 = vpack.c.b16 %v205, %v201
    %v326 = vpack.c.b16 %v206, %v202
    %v327 = vpack.c.b16 %v207, %v203
    %v328 = vpack.c.b16 %v212, %v208
    %v329 = vpack.c.b16 %v213, %v209
    %v330 = vpack.c.b16 %v214, %v210
    %v331 = vpack.c.b16 %v215, %v211
    %v332 = vpack.c.b16 %v220, %v216
    %v333 = vpack.c.b16 %v221, %v217
    %v334 = vpack.c.b16 %v222, %v218
    %v335 = vpack.c.b16 %v223, %v219
    %v336 = vpack.c.b16 %v228, %v224
    %v337 = vpack.c.b16 %v229, %v225
    %v338 = vpack.c.b16 %v230, %v226
    %v339 = vpack.c.b16 %v231, %v227
    %v340 = vpack.c.b16 %v236, %v232
    %v341 = vpack.c.b16 %v237, %v233
    %v342 = vpack.c.b16 %v238, %v234
    %v343 = vpack.c.b16 %v239, %v235
    %v344 = vpack.c.b16 %v244, %v240
    %v345 = vpack.c.b16 %v245, %v241
    %v346 = vpack.c.b16 %v246, %v242
    %v347 = vpack.c.b16 %v247, %v243
    %v348 = vpack.c.b16 %v252, %v248
    %v349 = vpack.c.b16 %v253, %v249
    %v350 = vpack.c.b16 %v254, %v250
    %v351 = vpack.c.b16 %v255, %v251
    %v352 = vpack.c.b16 %v260, %v256
    %v353 = vpack.c.b16 %v261, %v257
    %v354 = vpack.c.b16 %v262, %v258
    %v355 = vpack.c.b16 %v263, %v259
    %v356 = vpack.c.b16 %v268, %v264
    %v357 = vpack.c.b16 %v269, %v265
    %v358 = vpack.c.b16 %v270, %v266
    %v359 = vpack.c.b16 %v271, %v267
    %v360 = vpack.c.b16 %v276, %v272
    %v361 = vpack.c.b16 %v277, %v273
    %v362 = vpack.c.b16 %v278, %v274
    %v363 = vpack.c.b16 %v279, %v275
    %v364 = vpack.c.b16 %v284, %v280
    %v365 = vpack.c.b16 %v285, %v281
    %v366 = vpack.c.b16 %v286, %v282
    %v367 = vpack.c.b16 %v287, %v283
    %v368 = vpack.c.b16 %v292, %v288
    %v369 = vpack.c.b16 %v293, %v289
    %v370 = vpack.c.b16 %v294, %v290
    %v371 = vpack.c.b16 %v295, %v291
    %v372 = vpack.c.b16 %v300, %v296
    %v373 = vpack.c.b16 %v301, %v297
    %v374 = vpack.c.b16 %v302, %v298
    %v375 = vpack.c.b16 %v303, %v299
    %v376 = vpack.c.b16 %v308, %v304
    %v377 = vpack.c.b16 %v309, %v305
    %v378 = vpack.c.b16 %v310, %v306
    %v379 = vpack.c.b16 %v311, %v307
    %v380 = vpack.c.b16 %v316, %v312
    %v381 = vpack.c.b16 %v317, %v313
    %v382 = vpack.c.b16 %v318, %v314
    %v383 = vpack.c.b16 %v319, %v315
    %448 = vmatpush.bf16.msra.mxu0 %v348
    %449 = vmatpush.bf16.msra.mxu0 %v344
    %450 = vmatpush.bf16.msra.mxu0 %v340
    %451 = vmatpush.bf16.msra.mxu0 %v336
    %452 = vmatpush.bf16.msra.mxu0 %v332
    %453 = vmatpush.bf16.msra.mxu0 %v328
    %454 = vmatpush.bf16.msra.mxu0 %v324
    %455 = vmatpush.bf16.msra.mxu0 %v320
    %456 = vmatmul.bf16.gmra.mxu0 %v52
    %v457 = vpop.f32.mrf.mxu0
    %v458 = vadd.f32 %v120, %v457
    %v459 = vpop.f32.mrf.mxu0
    %460 = vdwg.mxu0
    %461 = vmatpush.bf16.msra.mxu0 %v380
    %462 = vmatpush.bf16.msra.mxu0 %v376
    %463 = vmatpush.bf16.msra.mxu0 %v372
    %464 = vmatpush.bf16.msra.mxu0 %v368
    %465 = vmatpush.bf16.msra.mxu0 %v364
    %466 = vmatpush.bf16.msra.mxu0 %v360
    %467 = vmatpush.bf16.msra.mxu0 %v356
    %468 = vmatpush.bf16.msra.mxu0 %v352
    %469 = vmatmul.bf16.gmra.mxu0 %v53
    %v470 = vpop.f32.mrf.mxu0
    %v471 = vadd.f32 %v458, %v470
    %v472 = vpop.f32.mrf.mxu0
    %473 = vdwg.mxu0
    %474 = vmatpush.bf16.msra.mxu0 %v349
    %475 = vmatpush.bf16.msra.mxu0 %v345
    %476 = vmatpush.bf16.msra.mxu0 %v341
    %477 = vmatpush.bf16.msra.mxu0 %v337
    %478 = vmatpush.bf16.msra.mxu0 %v333
    %479 = vmatpush.bf16.msra.mxu0 %v329
    %480 = vmatpush.bf16.msra.mxu0 %v325
    %481 = vmatpush.bf16.msra.mxu0 %v321
    %482 = vmatmul.bf16.gmra.mxu0 %v52
    %v483 = vpop.f32.mrf.mxu0
    %v484 = vadd.f32 %v121, %v483
    %v485 = vpop.f32.mrf.mxu0
    %486 = vdwg.mxu0
    %487 = vmatpush.bf16.msra.mxu0 %v381
    %488 = vmatpush.bf16.msra.mxu0 %v377
    %489 = vmatpush.bf16.msra.mxu0 %v373
    %490 = vmatpush.bf16.msra.mxu0 %v369
    %491 = vmatpush.bf16.msra.mxu0 %v365
    %492 = vmatpush.bf16.msra.mxu0 %v361
    %493 = vmatpush.bf16.msra.mxu0 %v357
    %494 = vmatpush.bf16.msra.mxu0 %v353
    %495 = vmatmul.bf16.gmra.mxu0 %v53
    %v496 = vpop.f32.mrf.mxu0
    %v497 = vadd.f32 %v484, %v496
    %v498 = vpop.f32.mrf.mxu0
    %499 = vdwg.mxu0
    %500 = vmatpush.bf16.msra.mxu0 %v350
    %501 = vmatpush.bf16.msra.mxu0 %v346
    %502 = vmatpush.bf16.msra.mxu0 %v342
    %503 = vmatpush.bf16.msra.mxu0 %v338
    %504 = vmatpush.bf16.msra.mxu0 %v334
    %505 = vmatpush.bf16.msra.mxu0 %v330
    %506 = vmatpush.bf16.msra.mxu0 %v326
    %507 = vmatpush.bf16.msra.mxu0 %v322
    %508 = vmatmul.bf16.gmra.mxu0 %v52
    %v509 = vpop.f32.mrf.mxu0
    %v510 = vadd.f32 %v122, %v509
    %v511 = vpop.f32.mrf.mxu0
    %512 = vdwg.mxu0
    %513 = vmatpush.bf16.msra.mxu0 %v382
    %514 = vmatpush.bf16.msra.mxu0 %v378
    %515 = vmatpush.bf16.msra.mxu0 %v374
    %516 = vmatpush.bf16.msra.mxu0 %v370
    %517 = vmatpush.bf16.msra.mxu0 %v366
    %518 = vmatpush.bf16.msra.mxu0 %v362
    %519 = vmatpush.bf16.msra.mxu0 %v358
    %520 = vmatpush.bf16.msra.mxu0 %v354
    %521 = vmatmul.bf16.gmra.mxu0 %v53
    %v522 = vpop.f32.mrf.mxu0
    %v523 = vadd.f32 %v510, %v522
    %v524 = vpop.f32.mrf.mxu0
    %525 = vdwg.mxu0
    %526 = vmatpush.bf16.msra.mxu0 %v351
    %527 = vmatpush.bf16.msra.mxu0 %v347
    %528 = vmatpush.bf16.msra.mxu0 %v343
    %529 = vmatpush.bf16.msra.mxu0 %v339
    %530 = vmatpush.bf16.msra.mxu0 %v335
    %531 = vmatpush.bf16.msra.mxu0 %v331
    %532 = vmatpush.bf16.msra.mxu0 %v327
    %533 = vmatpush.bf16.msra.mxu0 %v323
    %534 = vmatmul.bf16.gmra.mxu0 %v52
    %v535 = vpop.f32.mrf.mxu0
    %v536 = vadd.f32 %v123, %v535
    %v537 = vpop.f32.mrf.mxu0
    %538 = vdwg.mxu0
    %539 = vmatpush.bf16.msra.mxu0 %v383
    %540 = vmatpush.bf16.msra.mxu0 %v379
    %541 = vmatpush.bf16.msra.mxu0 %v375
    %542 = vmatpush.bf16.msra.mxu0 %v371
    %543 = vmatpush.bf16.msra.mxu0 %v367
    %544 = vmatpush.bf16.msra.mxu0 %v363
    %545 = vmatpush.bf16.msra.mxu0 %v359
    %546 = vmatpush.bf16.msra.mxu0 %v355
    %547 = vmatmul.bf16.gmra.mxu0 %v53
    %v548 = vpop.f32.mrf.mxu0
    %v549 = vadd.f32 %v536, %v548
    %v550 = vpop.f32.mrf.mxu0
    %551 = vdwg.mxu0
    %v552 = vxor.u32 %v471, 2147483648
    %v553 = vmul.f32 %v552, 1.442695
    %v554 = vpow.pop %v553
    %v555 = vadd.f32 %v554, 1.0
    %v556 = vrcp.pop %v555
    %v557 = vmul.f32 %v555, %v556
    %v558 = vsub.f32 1.0, %v557
    %v559 = vmul.f32 %v556, %v558
    %v560 = vadd.f32 %v556, %v559
    %vm561 = vweird.f32 %v555
    %vm562 = vweird.f32 %v556
    %vm563 = vmor %vm561, %vm562
    %v564 = vsel %vm563, %v556, %v560
    %v565 = vand.u32 2147483647, %v555
    %vm566 = vcmp.eq.f32.partialorder %v565, 8.507059e+37
    %v567 = vand.u32 %v555, 2147483648
    %v568 = vor.u32 1.1754944e-38, %v567
    %v569 = vsel %vm566, %v568, %v564
    %v570 = vmul.f32 1.0, %v569
    %v571 = vxor.u32 %v497, 2147483648
    %v572 = vmul.f32 %v571, 1.442695
    %v573 = vpow.pop %v572
    %v574 = vadd.f32 %v573, 1.0
    %v575 = vrcp.pop %v574
    %v576 = vmul.f32 %v574, %v575
    %v577 = vsub.f32 1.0, %v576
    %v578 = vmul.f32 %v575, %v577
    %v579 = vadd.f32 %v575, %v578
    %vm580 = vweird.f32 %v574
    %vm581 = vweird.f32 %v575
    %vm582 = vmor %vm580, %vm581
    %v583 = vsel %vm582, %v575, %v579
    %v584 = vand.u32 2147483647, %v574
    %vm585 = vcmp.eq.f32.partialorder %v584, 8.507059e+37
    %v586 = vand.u32 %v574, 2147483648
    %v587 = vor.u32 1.1754944e-38, %v586
    %v588 = vsel %vm585, %v587, %v583
    %v589 = vmul.f32 1.0, %v588
    %v590 = vtanh.pop %v523
    %v591 = vxor.u32 %v549, 2147483648
    %v592 = vmul.f32 %v591, 1.442695
    %v593 = vpow.pop %v592
    %v594 = vadd.f32 %v593, 1.0
    %v595 = vrcp.pop %v594
    %v596 = vmul.f32 %v594, %v595
    %v597 = vsub.f32 1.0, %v596
    %v598 = vmul.f32 %v595, %v597
    %v599 = vadd.f32 %v595, %v598
    %vm600 = vweird.f32 %v594
    %vm601 = vweird.f32 %v595
    %vm602 = vmor %vm600, %vm601
    %v603 = vsel %vm602, %v595, %v599
    %v604 = vand.u32 2147483647, %v594
    %vm605 = vcmp.eq.f32.partialorder %v604, 8.507059e+37
    %v606 = vand.u32 %v594, 2147483648
    %v607 = vor.u32 1.1754944e-38, %v606
    %v608 = vsel %vm605, %v607, %v603
    %v609 = vmul.f32 1.0, %v608
    %v610 = vmul.f32 %v589, %v51
    %v611 = vmul.f32 %v570, %v590
    %v612 = vadd.f32 %v610, %v611
    %v613 = vtanh.pop %v612
    %v614 = vmul.f32 %v609, %v613
    %v615 = vpack.c.bf16 %v614, %v614
    %v616 = vld [vmem:[#allocation4] sm:$0xf]
    %v617 = vld [vmem:[#allocation4 + $0x4] sm:$0xf]
    %v618 = vld [vmem:[#allocation4 + $0x8] sm:$0xf]
    %v619 = vld [vmem:[#allocation4 + $0xc] sm:$0xf]
    %v620 = vld [vmem:[#allocation4 + $0x10] sm:$0xf]
    %v621 = vld [vmem:[#allocation4 + $0x14] sm:$0xf]
    %v622 = vld [vmem:[#allocation4 + $0x18] sm:$0xf]
    %v623 = vld [vmem:[#allocation4 + $0x1c] sm:$0xf]
    %v624 = vld [vmem:[#allocation4 + $0x20] sm:$0xf]
    %v625 = vld [vmem:[#allocation4 + $0x24] sm:$0xf]
    %v626 = vld [vmem:[#allocation4 + $0x28] sm:$0xf]
    %v627 = vld [vmem:[#allocation4 + $0x2c] sm:$0xf]
    %v628 = vld [vmem:[#allocation4 + $0x30] sm:$0xf]
    %v629 = vld [vmem:[#allocation4 + $0x34] sm:$0xf]
    %v630 = vld [vmem:[#allocation4 + $0x38] sm:$0xf]
    %v631 = vld [vmem:[#allocation4 + $0x3c] sm:$0xf]
    %v632 = vld [vmem:[%s2 + $0x4] sm:$0x1]
    %v634 = vperm.slane %v632, 0
    %v652 = vunpack.c.l.b16 %v616
    %v653 = vunpack.c.l.b16 %v617
    %v654 = vunpack.c.l.b16 %v618
    %v655 = vunpack.c.l.b16 %v619
    %v656 = vunpack.c.l.b16 %v620
    %v657 = vunpack.c.l.b16 %v621
    %v658 = vunpack.c.l.b16 %v622
    %v659 = vunpack.c.l.b16 %v623
    %v660 = vunpack.c.l.b16 %v624
    %v661 = vunpack.c.l.b16 %v625
    %v662 = vunpack.c.l.b16 %v626
    %v663 = vunpack.c.l.b16 %v627
    %v664 = vunpack.c.l.b16 %v628
    %v665 = vunpack.c.l.b16 %v629
    %v666 = vunpack.c.l.b16 %v630
    %v667 = vunpack.c.l.b16 %v631
    %v668 = vpack.c.b16 %v653, %v652
    %v669 = vpack.c.b16 %v655, %v654
    %v670 = vpack.c.b16 %v657, %v656
    %v671 = vpack.c.b16 %v659, %v658
    %v672 = vpack.c.b16 %v661, %v660
    %v673 = vpack.c.b16 %v663, %v662
    %v674 = vpack.c.b16 %v665, %v664
    %v675 = vpack.c.b16 %v667, %v666
    %684 = vmatpush.bf16.msra.mxu0 %v675
    %685 = vmatpush.bf16.msra.mxu0 %v674
    %686 = vmatpush.bf16.msra.mxu0 %v673
    %687 = vmatpush.bf16.msra.mxu0 %v672
    %688 = vmatpush.bf16.msra.mxu0 %v671
    %689 = vmatpush.bf16.msra.mxu0 %v670
    %690 = vmatpush.bf16.msra.mxu0 %v669
    %691 = vmatpush.bf16.msra.mxu0 %v668
    %692 = vmatmul.bf16.gmra.mxu0 %v615
    %v693 = vpop.f32.mrf.mxu0
    %v694 = vadd.f32 %v634, %v693
    %v695 = vpop.f32.mrf.mxu0
    %696 = vdwg.mxu0
    %697 = vst [vmem:[%s4] sm:$0xff] %v694
    %698 = vst [vmem:[%s4 + $0x8] sm:$0xff] %v614
    %699 = vst [vmem:[%s4 + $0x10] sm:$0xff] %v612
    // Predicated region
    $region26: #{lstm_decoder_forward.1} parent=1 // pred_check
      _
    $region27: #{lstm_decoder_forward.1} parent=1 // pred_check_branch
      %701 = sbr.rel (0) target = $region29
    $region28: #{lstm_decoder_forward.1} parent=1 // pred_region
      _
    $region29: #{lstm_decoder_forward.1} parent=1 // pred_fallthru
      _
    // Predicated region
    $region30: #{lstm_decoder_forward.1} parent=1 // pred_check
      _
    $region31: #{lstm_decoder_forward.1} parent=1 // pred_check_branch
      %703 = sbr.rel (0) target = $region33
    $region32: #{lstm_decoder_forward.1} parent=1 // pred_region
      _
    $region33: #{lstm_decoder_forward.1} parent=1 // pred_fallthru
      _
    %704 = vsyncpa [#allocation3], 1
    %705 = vsyncpa [#allocation5], 1

</llo_original>
